<compile_context>
chip_gen: v5e
topology: v5e:2x2
jax: 0.10.0
libtpu: 0.0.40
codegen_flags: <defaults>
</compile_context>

<pallas_src>
import functools

import jax
import jax.numpy as jnp
from jax.experimental import pallas as pl
from jax.experimental.pallas import tpu as pltpu

_LANE = 128
_SUBLANE = 8


def _round_up(v, m):
    return (v + m - 1) // m * m


def _vmem_capacity_bytes():
    try:
        return int(pltpu.get_tpu_info().vmem_capacity_bytes)
    except Exception:
        return 128 << 20  # conservative fallback (v5e/v6e physical VMEM)


# -----------------------------------------------------------------------------
# Kernel
# -----------------------------------------------------------------------------
def _mlp_kernel(num_layers, dims_pad, compute_dtype, x_ref, *refs):
    """Fused MLP: out = L_n(relu(...relu(L_1(x))...)).

    refs = (w1, b1, ..., wn, bn, out_ref, h_scratch)
    x / w are `compute_dtype` (bf16 MXU inputs); bias add, ReLU and the
    accumulator stay f32.
    """
    out_ref = refs[2 * num_layers]
    h_scratch = refs[2 * num_layers + 1]

    h = x_ref[...]                                     # (tile_b, d_in_pad)
    for i in range(num_layers):
        w = refs[2 * i][...]                           # (d_in_pad, d_out_pad)
        b = refs[2 * i + 1][...]                       # (1, d_out_pad) f32
        acc = jnp.dot(h, w, preferred_element_type=jnp.float32) + b
        if i < num_layers - 1:
            acc = jnp.maximum(acc, 0.0)                # ReLU in f32 on the VPU
            # TODO(synk): 'sine' activation variant would use jnp.sin(30*acc).
            d = dims_pad[i + 1]
            # Deliberately stage the f32 intermediate through VMEM scratch
            # (for large tiles it would spill anyway; this keeps it explicit).
            h_scratch[:, :d] = acc
            h = h_scratch[:, :d].astype(compute_dtype)  # bf16 for next MXU pass
        else:
            out_ref[...] = acc.astype(out_ref.dtype)


# -----------------------------------------------------------------------------
# Wrapper
# -----------------------------------------------------------------------------
def prepare_mlp_params(weights, biases, *, compute_dtype=jnp.bfloat16):
    """Pad/cast parameters ONCE (call at init time, not per forward call)."""
    dims = [weights[0].shape[0]] + [w.shape[1] for w in weights]
    dims_pad = tuple(_round_up(d, _LANE) for d in dims)

    padded = []
    for i, (w, b) in enumerate(zip(weights, biases)):
        wp = jnp.zeros((dims_pad[i], dims_pad[i + 1]), compute_dtype)
        wp = wp.at[: w.shape[0], : w.shape[1]].set(w.astype(compute_dtype))
        bp = jnp.zeros((1, dims_pad[i + 1]), jnp.float32)
        bp = bp.at[:, : b.shape[-1]].set(b.reshape(1, -1).astype(jnp.float32))
        padded += [wp, bp]

    meta = {
        "dims": tuple(dims),
        "dims_pad": dims_pad,
        "num_layers": len(weights),
        "compute_dtype": compute_dtype,
    }
    return padded, meta


def mlp_forward(x, padded_params, meta, *, out_dtype=None):
    """Pallas-fused MLP forward; returns the same dict as the PyTorch module."""
    num_layers = meta["num_layers"]
    dims = meta["dims"]
    dims_pad = meta["dims_pad"]
    compute_dtype = meta["compute_dtype"]
    out_dtype = x.dtype if out_dtype is None else out_dtype

    n, d_in = x.shape
    assert d_in == dims[0], "input feature dim mismatch"
    d_out = dims[-1]

    # --- batch tile: big tiles amortize per-step overhead & fill the MXU;
    #     tiny batches only pad to a sublane multiple.
    if n >= 1024:
        tile_b = 512
    elif n >= 512:
        tile_b = 256
    elif n >= 128:
        tile_b = 128
    else:
        tile_b = _round_up(n, _SUBLANE)

    hid_pad = max(dims_pad[1:-1]) if num_layers > 1 else _LANE
    c_item = jnp.dtype(compute_dtype).itemsize
    o_item = jnp.dtype(out_dtype).itemsize
    param_bytes = sum(int(p.size) * p.dtype.itemsize for p in padded_params)
    vmem_cap = int(0.85 * _vmem_capacity_bytes())

    def _need(tb, param_bufs):
        return (param_bufs * param_bytes
                + 2 * tb * dims_pad[0] * c_item        # double-buffered x tile
                + 2 * tb * dims_pad[-1] * o_item       # double-buffered out tile
                + tb * hid_pad * 4)                    # f32 intermediate scratch

    # Shrink the batch tile until the resident footprint fits VMEM.
    while tile_b > _SUBLANE and _need(tile_b, 1) > vmem_cap:
        tile_b = max(_SUBLANE, tile_b // 2)
    # TODO(synk): if the parameters alone exceed VMEM (very wide hidden dims on
    # v7x's 64 MiB), a weight-tiled path (second grid axis over N, or
    # pltpu.emit_pipeline over K with a pl.when-initialized accumulator) is
    # needed; not required for the sizes exercised here.

    n_pad = _round_up(max(n, tile_b), tile_b)

    # --- pad the activations only (params were padded once at init) ----------
    x_p = jnp.zeros((n_pad, dims_pad[0]), compute_dtype)
    x_p = x_p.at[:n, :d_in].set(x.astype(compute_dtype))

    grid = (n_pad // tile_b,)
    _resident = lambda i: (0, 0)   # constant index_map: params stay in VMEM

    def _build(single_buffer_params):
        if single_buffer_params:
            param_spec = lambda shape: pl.BlockSpec(
                shape, _resident, pipeline_mode=pl.Buffered(1))
            bufs = 1
        else:
            param_spec = lambda shape: pl.BlockSpec(shape, _resident)
            bufs = 2
        vmem_limit = int(min(vmem_cap,
                             max(_need(tile_b, bufs) + (4 << 20), 16 << 20)))
        in_specs = [pl.BlockSpec((tile_b, dims_pad[0]), lambda i: (i, 0))]
        in_specs += [param_spec(p.shape) for p in padded_params]
        out_specs = pl.BlockSpec((tile_b, dims_pad[-1]), lambda i: (i, 0))
        return pl.pallas_call(
            functools.partial(_mlp_kernel, num_layers, dims_pad, compute_dtype),
            out_shape=jax.ShapeDtypeStruct((n_pad, dims_pad[-1]), out_dtype),
            grid=grid,
            in_specs=in_specs,
            out_specs=out_specs,
            scratch_shapes=[pltpu.VMEM((tile_b, hid_pad), jnp.float32)],
            compiler_params=pltpu.CompilerParams(
                dimension_semantics=("parallel",),   # batch across TCs on v7x
                vmem_limit_bytes=vmem_limit,
            ),
        )

    try:
        out_p = jax.block_until_ready(_build(True)(x_p, *padded_params))
    except Exception:
        # Fallback: default double-buffered resident params.
        out_p = jax.block_until_ready(_build(False)(x_p, *padded_params))

    out = out_p[:n, :d_out]
    # forward() of the PyTorch module returns both the input and the prediction.
    return {"model_input": x, "model_pred": out}


# -----------------------------------------------------------------------------
# Init + reference
# -----------------------------------------------------------------------------
def init_mlp_params(key, size):
    """Deterministic init mimicking nn.Linear default (kaiming-uniform-ish)."""
    weights, biases = [], []
    for i in range(len(size) - 1):
        d_in, d_out = size[i], size[i + 1]
        key, kw, kb = jax.random.split(key, 3)
        bound = 1.0 / jnp.sqrt(d_in)
        # stored as (d_in, d_out): transpose of PyTorch's (out, in) layout.
        w = jax.random.uniform(kw, (d_in, d_out), jnp.float32, -bound, bound)
        b = jax.random.uniform(kb, (1, d_out), jnp.float32, -bound, bound)
        weights.append(w)
        biases.append(b)
    return weights, biases


def mlp_reference(x, weights, biases, compute_dtype=jnp.bfloat16):
    """Pure-JAX reference with the same bf16-MXU / f32-accumulate numerics."""
    h = x.astype(compute_dtype)
    out = None
    for i, (w, b) in enumerate(zip(weights, biases)):
        acc = jnp.dot(h, w.astype(compute_dtype),
                      preferred_element_type=jnp.float32) + b.astype(jnp.float32)
        if i < len(weights) - 1:
            acc = jnp.maximum(acc, 0.0)
            h = acc.astype(compute_dtype)
        else:
            out = acc
    return out.astype(x.dtype)


if __name__ == "__main__":
    # MLP(size=[4, 32, 32, 8], activation='relu', bias=True) — module defaults.
    # TODO(synk): PosEncoding (num_pos_encoding>0), 'sine' activation and
    # output_softmax are not implemented (module defaults are covered).
    size = [4, 32, 32, 8]
    batch = 8

    key = jax.random.PRNGKey(0)
    key, kx = jax.random.split(key)
    x = jax.random.normal(kx, (batch, size[0]), jnp.float32)

    weights, biases = init_mlp_params(key, size)
    padded_params, meta = prepare_mlp_params(weights, biases)   # once, at init

    out = mlp_forward(x, padded_params, meta)
    jax.block_until_ready(out["model_pred"])

    # correctness check against a numerics-matched plain-JAX reference
    ref = mlp_reference(x, weights, biases)
    assert out["model_pred"].shape == (batch, size[-1]), "bad output shape"
    assert jnp.allclose(out["model_pred"], ref, atol=1e-3, rtol=1e-3), "mismatch"
    assert jnp.allclose(out["model_input"], x), "input passthrough mismatch"

    print("KERNEL_OK")
</pallas_src>

<mosaic_0001>
module attributes {stable_mosaic.version = 11 : i64} {
  func.func @_mlp_kernel(%arg0: i32, %arg1: memref<8x128xbf16, #tpu.memory_space<vmem>>, %arg2: memref<128x128xbf16, #tpu.memory_space<vmem>>, %arg3: memref<1x128xf32, #tpu.memory_space<vmem>>, %arg4: memref<128x128xbf16, #tpu.memory_space<vmem>>, %arg5: memref<1x128xf32, #tpu.memory_space<vmem>>, %arg6: memref<128x128xbf16, #tpu.memory_space<vmem>>, %arg7: memref<1x128xf32, #tpu.memory_space<vmem>>, %arg8: memref<8x128xf32, #tpu.memory_space<vmem>>, %arg9: memref<8x128xf32, #tpu.memory_space<vmem>>) attributes {dimension_semantics = [#tpu.dimension_semantics<parallel>], iteration_bounds = array<i64: 1>, scalar_prefetch = 0 : i64, scratch_operands = 1 : i64, tpu.core_type = #tpu.core_type<tc>, window_params = [{transform_indices = @transform_0, window_bounds = array<i64: 8, 128>}, {pipeline_mode = #tpu.pipeline_mode<synchronous>, transform_indices = @transform_1, window_bounds = array<i64: 128, 128>}, {pipeline_mode = #tpu.pipeline_mode<synchronous>, transform_indices = @transform_2, window_bounds = array<i64: 1, 128>}, {pipeline_mode = #tpu.pipeline_mode<synchronous>, transform_indices = @transform_3, window_bounds = array<i64: 128, 128>}, {pipeline_mode = #tpu.pipeline_mode<synchronous>, transform_indices = @transform_4, window_bounds = array<i64: 1, 128>}, {pipeline_mode = #tpu.pipeline_mode<synchronous>, transform_indices = @transform_5, window_bounds = array<i64: 128, 128>}, {pipeline_mode = #tpu.pipeline_mode<synchronous>, transform_indices = @transform_6, window_bounds = array<i64: 1, 128>}, {transform_indices = @transform_7, window_bounds = array<i64: 8, 128>}]} {
    %c0 = arith.constant 0 : index
    %c0_0 = arith.constant 0 : index
    %0 = vector.load %arg1[%c0, %c0_0] : memref<8x128xbf16, #tpu.memory_space<vmem>>, vector<8x128xbf16>
    %c0_1 = arith.constant 0 : index
    %c0_2 = arith.constant 0 : index
    %1 = vector.load %arg2[%c0_1, %c0_2] : memref<128x128xbf16, #tpu.memory_space<vmem>>, vector<128x128xbf16>
    %c0_3 = arith.constant 0 : index
    %c0_4 = arith.constant 0 : index
    %2 = vector.load %arg3[%c0_3, %c0_4] : memref<1x128xf32, #tpu.memory_space<vmem>>, vector<1x128xf32>
    %cst = arith.constant dense<0.000000e+00> : vector<8x128xf32>
    %3 = tpu.matmul %0, %1, %cst {dimension_numbers = #tpu.dot_dimension_numbers<[1], [0], [0], [1], [0, 0, 1, 1], [], []>} : vector<8x128xbf16>, vector<128x128xbf16>, vector<8x128xf32> -> vector<8x128xf32>
    %4 = vector.broadcast %2 : vector<1x128xf32> to vector<8x128xf32>
    %5 = arith.addf %3, %4 : vector<8x128xf32>
    %cst_5 = arith.constant 0.000000e+00 : f32
    %6 = vector.broadcast %cst_5 : f32 to vector<8x128xf32>
    %7 = arith.maximumf %5, %6 : vector<8x128xf32>
    %c0_6 = arith.constant 0 : index
    %c0_7 = arith.constant 0 : index
    %8 = vector.load %arg9[%c0_6, %c0_7] : memref<8x128xf32, #tpu.memory_space<vmem>>, vector<8x128xf32>
    tpu.vector_store %arg9[%c0_6, %c0_7], %7 {strides = array<i32>} : memref<8x128xf32, #tpu.memory_space<vmem>>, vector<8x128xf32>,
    %c0_8 = arith.constant 0 : index
    %c0_9 = arith.constant 0 : index
    %9 = vector.load %arg9[%c0_8, %c0_9] : memref<8x128xf32, #tpu.memory_space<vmem>>, vector<8x128xf32>
    %10 = arith.truncf %9 : vector<8x128xf32> to vector<8x128xbf16>
    %c0_10 = arith.constant 0 : index
    %c0_11 = arith.constant 0 : index
    %11 = vector.load %arg4[%c0_10, %c0_11] : memref<128x128xbf16, #tpu.memory_space<vmem>>, vector<128x128xbf16>
    %c0_12 = arith.constant 0 : index
    %c0_13 = arith.constant 0 : index
    %12 = vector.load %arg5[%c0_12, %c0_13] : memref<1x128xf32, #tpu.memory_space<vmem>>, vector<1x128xf32>
    %cst_14 = arith.constant dense<0.000000e+00> : vector<8x128xf32>
    %13 = tpu.matmul %10, %11, %cst_14 {dimension_numbers = #tpu.dot_dimension_numbers<[1], [0], [0], [1], [0, 0, 1, 1], [], []>} : vector<8x128xbf16>, vector<128x128xbf16>, vector<8x128xf32> -> vector<8x128xf32>
    %14 = vector.broadcast %12 : vector<1x128xf32> to vector<8x128xf32>
    %15 = arith.addf %13, %14 : vector<8x128xf32>
    %cst_15 = arith.constant 0.000000e+00 : f32
    %16 = vector.broadcast %cst_15 : f32 to vector<8x128xf32>
    %17 = arith.maximumf %15, %16 : vector<8x128xf32>
    %c0_16 = arith.constant 0 : index
    %c0_17 = arith.constant 0 : index
    %18 = vector.load %arg9[%c0_16, %c0_17] : memref<8x128xf32, #tpu.memory_space<vmem>>, vector<8x128xf32>
    tpu.vector_store %arg9[%c0_16, %c0_17], %17 {strides = array<i32>} : memref<8x128xf32, #tpu.memory_space<vmem>>, vector<8x128xf32>,
    %c0_18 = arith.constant 0 : index
    %c0_19 = arith.constant 0 : index
    %19 = vector.load %arg9[%c0_18, %c0_19] : memref<8x128xf32, #tpu.memory_space<vmem>>, vector<8x128xf32>
    %20 = arith.truncf %19 : vector<8x128xf32> to vector<8x128xbf16>
    %c0_20 = arith.constant 0 : index
    %c0_21 = arith.constant 0 : index
    %21 = vector.load %arg6[%c0_20, %c0_21] : memref<128x128xbf16, #tpu.memory_space<vmem>>, vector<128x128xbf16>
    %c0_22 = arith.constant 0 : index
    %c0_23 = arith.constant 0 : index
    %22 = vector.load %arg7[%c0_22, %c0_23] : memref<1x128xf32, #tpu.memory_space<vmem>>, vector<1x128xf32>
    %cst_24 = arith.constant dense<0.000000e+00> : vector<8x128xf32>
    %23 = tpu.matmul %20, %21, %cst_24 {dimension_numbers = #tpu.dot_dimension_numbers<[1], [0], [0], [1], [0, 0, 1, 1], [], []>} : vector<8x128xbf16>, vector<128x128xbf16>, vector<8x128xf32> -> vector<8x128xf32>
    %24 = vector.broadcast %22 : vector<1x128xf32> to vector<8x128xf32>
    %25 = arith.addf %23, %24 : vector<8x128xf32>
    %c0_25 = arith.constant 0 : index
    %c0_26 = arith.constant 0 : index
    %26 = vector.load %arg8[%c0_25, %c0_26] : memref<8x128xf32, #tpu.memory_space<vmem>>, vector<8x128xf32>
    tpu.vector_store %arg8[%c0_25, %c0_26], %25 {strides = array<i32>} : memref<8x128xf32, #tpu.memory_space<vmem>>, vector<8x128xf32>,
    return
  }
  func.func @transform_0(%arg0: i32) -> (i32, i32) {
    %c0_i32 = arith.constant 0 : i32
    %c0_i32_0 = arith.constant 0 : i32
    return %arg0, %c0_i32 : i32, i32
  }
  func.func @transform_1(%arg0: i32) -> (i32, i32) {
    %c0_i32 = arith.constant 0 : i32
    %c0_i32_0 = arith.constant 0 : i32
    %c0_i32_1 = arith.constant 0 : i32
    return %c0_i32, %c0_i32_0 : i32, i32
  }
  func.func @transform_2(%arg0: i32) -> (i32, i32) {
    %c0_i32 = arith.constant 0 : i32
    %c0_i32_0 = arith.constant 0 : i32
    %c0_i32_1 = arith.constant 0 : i32
    return %c0_i32, %c0_i32_0 : i32, i32
  }
  func.func @transform_3(%arg0: i32) -> (i32, i32) {
    %c0_i32 = arith.constant 0 : i32
    %c0_i32_0 = arith.constant 0 : i32
    %c0_i32_1 = arith.constant 0 : i32
    return %c0_i32, %c0_i32_0 : i32, i32
  }
  func.func @transform_4(%arg0: i32) -> (i32, i32) {
    %c0_i32 = arith.constant 0 : i32
    %c0_i32_0 = arith.constant 0 : i32
    %c0_i32_1 = arith.constant 0 : i32
    return %c0_i32, %c0_i32_0 : i32, i32
  }
  func.func @transform_5(%arg0: i32) -> (i32, i32) {
    %c0_i32 = arith.constant 0 : i32
    %c0_i32_0 = arith.constant 0 : i32
    %c0_i32_1 = arith.constant 0 : i32
    return %c0_i32, %c0_i32_0 : i32, i32
  }
  func.func @transform_6(%arg0: i32) -> (i32, i32) {
    %c0_i32 = arith.constant 0 : i32
    %c0_i32_0 = arith.constant 0 : i32
    %c0_i32_1 = arith.constant 0 : i32
    return %c0_i32, %c0_i32_0 : i32, i32
  }
  func.func @transform_7(%arg0: i32) -> (i32, i32) {
    %c0_i32 = arith.constant 0 : i32
    %c0_i32_0 = arith.constant 0 : i32
    return %arg0, %c0_i32 : i32, i32
  }
}

module attributes {stable_mosaic.version = 11 : i64} {
  func.func @_mlp_kernel(%arg0: i32, %arg1: memref<8x128xbf16, #tpu.memory_space<vmem>>, %arg2: memref<128x128xbf16, #tpu.memory_space<vmem>>, %arg3: memref<1x128xf32, #tpu.memory_space<vmem>>, %arg4: memref<128x128xbf16, #tpu.memory_space<vmem>>, %arg5: memref<1x128xf32, #tpu.memory_space<vmem>>, %arg6: memref<128x128xbf16, #tpu.memory_space<vmem>>, %arg7: memref<1x128xf32, #tpu.memory_space<vmem>>, %arg8: memref<8x128xf32, #tpu.memory_space<vmem>>, %arg9: memref<8x128xf32, #tpu.memory_space<vmem>>) attributes {dimension_semantics = [#tpu.dimension_semantics<parallel>], iteration_bounds = array<i64: 1>, scalar_prefetch = 0 : i64, scratch_operands = 1 : i64, tpu.core_type = #tpu.core_type<tc>, window_params = [{transform_indices = @transform_0, window_bounds = array<i64: 8, 128>}, {pipeline_mode = #tpu.pipeline_mode<synchronous>, transform_indices = @transform_1, window_bounds = array<i64: 128, 128>}, {pipeline_mode = #tpu.pipeline_mode<synchronous>, transform_indices = @transform_2, window_bounds = array<i64: 1, 128>}, {pipeline_mode = #tpu.pipeline_mode<synchronous>, transform_indices = @transform_3, window_bounds = array<i64: 128, 128>}, {pipeline_mode = #tpu.pipeline_mode<synchronous>, transform_indices = @transform_4, window_bounds = array<i64: 1, 128>}, {pipeline_mode = #tpu.pipeline_mode<synchronous>, transform_indices = @transform_5, window_bounds = array<i64: 128, 128>}, {pipeline_mode = #tpu.pipeline_mode<synchronous>, transform_indices = @transform_6, window_bounds = array<i64: 1, 128>}, {transform_indices = @transform_7, window_bounds = array<i64: 8, 128>}]} {
    %c0 = arith.constant 0 : index
    %c0_0 = arith.constant 0 : index
    %0 = vector.load %arg1[%c0, %c0_0] : memref<8x128xbf16, #tpu.memory_space<vmem>>, vector<8x128xbf16>
    %c0_1 = arith.constant 0 : index
    %c0_2 = arith.constant 0 : index
    %1 = vector.load %arg2[%c0_1, %c0_2] : memref<128x128xbf16, #tpu.memory_space<vmem>>, vector<128x128xbf16>
    %c0_3 = arith.constant 0 : index
    %c0_4 = arith.constant 0 : index
    %2 = vector.load %arg3[%c0_3, %c0_4] : memref<1x128xf32, #tpu.memory_space<vmem>>, vector<1x128xf32>
    %cst = arith.constant dense<0.000000e+00> : vector<8x128xf32>
    %3 = tpu.matmul %0, %1, %cst {dimension_numbers = #tpu.dot_dimension_numbers<[1], [0], [0], [1], [0, 0, 1, 1], [], []>} : vector<8x128xbf16>, vector<128x128xbf16>, vector<8x128xf32> -> vector<8x128xf32>
    %4 = vector.broadcast %2 : vector<1x128xf32> to vector<8x128xf32>
    %5 = arith.addf %3, %4 : vector<8x128xf32>
    %cst_5 = arith.constant 0.000000e+00 : f32
    %6 = vector.broadcast %cst_5 : f32 to vector<8x128xf32>
    %7 = arith.maximumf %5, %6 : vector<8x128xf32>
    %c0_6 = arith.constant 0 : index
    %c0_7 = arith.constant 0 : index
    %8 = vector.load %arg9[%c0_6, %c0_7] : memref<8x128xf32, #tpu.memory_space<vmem>>, vector<8x128xf32>
    tpu.vector_store %arg9[%c0_6, %c0_7], %7 {strides = array<i32>} : memref<8x128xf32, #tpu.memory_space<vmem>>, vector<8x128xf32>,
    %c0_8 = arith.constant 0 : index
    %c0_9 = arith.constant 0 : index
    %9 = vector.load %arg9[%c0_8, %c0_9] : memref<8x128xf32, #tpu.memory_space<vmem>>, vector<8x128xf32>
    %10 = arith.truncf %9 : vector<8x128xf32> to vector<8x128xbf16>
    %c0_10 = arith.constant 0 : index
    %c0_11 = arith.constant 0 : index
    %11 = vector.load %arg4[%c0_10, %c0_11] : memref<128x128xbf16, #tpu.memory_space<vmem>>, vector<128x128xbf16>
    %c0_12 = arith.constant 0 : index
    %c0_13 = arith.constant 0 : index
    %12 = vector.load %arg5[%c0_12, %c0_13] : memref<1x128xf32, #tpu.memory_space<vmem>>, vector<1x128xf32>
    %cst_14 = arith.constant dense<0.000000e+00> : vector<8x128xf32>
    %13 = tpu.matmul %10, %11, %cst_14 {dimension_numbers = #tpu.dot_dimension_numbers<[1], [0], [0], [1], [0, 0, 1, 1], [], []>} : vector<8x128xbf16>, vector<128x128xbf16>, vector<8x128xf32> -> vector<8x128xf32>
    %14 = vector.broadcast %12 : vector<1x128xf32> to vector<8x128xf32>
    %15 = arith.addf %13, %14 : vector<8x128xf32>
    %cst_15 = arith.constant 0.000000e+00 : f32
    %16 = vector.broadcast %cst_15 : f32 to vector<8x128xf32>
    %17 = arith.maximumf %15, %16 : vector<8x128xf32>
    %c0_16 = arith.constant 0 : index
    %c0_17 = arith.constant 0 : index
    %18 = vector.load %arg9[%c0_16, %c0_17] : memref<8x128xf32, #tpu.memory_space<vmem>>, vector<8x128xf32>
    tpu.vector_store %arg9[%c0_16, %c0_17], %17 {strides = array<i32>} : memref<8x128xf32, #tpu.memory_space<vmem>>, vector<8x128xf32>,
    %c0_18 = arith.constant 0 : index
    %c0_19 = arith.constant 0 : index
    %19 = vector.load %arg9[%c0_18, %c0_19] : memref<8x128xf32, #tpu.memory_space<vmem>>, vector<8x128xf32>
    %20 = arith.truncf %19 : vector<8x128xf32> to vector<8x128xbf16>
    %c0_20 = arith.constant 0 : index
    %c0_21 = arith.constant 0 : index
    %21 = vector.load %arg6[%c0_20, %c0_21] : memref<128x128xbf16, #tpu.memory_space<vmem>>, vector<128x128xbf16>
    %c0_22 = arith.constant 0 : index
    %c0_23 = arith.constant 0 : index
    %22 = vector.load %arg7[%c0_22, %c0_23] : memref<1x128xf32, #tpu.memory_space<vmem>>, vector<1x128xf32>
    %cst_24 = arith.constant dense<0.000000e+00> : vector<8x128xf32>
    %23 = tpu.matmul %20, %21, %cst_24 {dimension_numbers = #tpu.dot_dimension_numbers<[1], [0], [0], [1], [0, 0, 1, 1], [], []>} : vector<8x128xbf16>, vector<128x128xbf16>, vector<8x128xf32> -> vector<8x128xf32>
    %24 = vector.broadcast %22 : vector<1x128xf32> to vector<8x128xf32>
    %25 = arith.addf %23, %24 : vector<8x128xf32>
    %c0_25 = arith.constant 0 : index
    %c0_26 = arith.constant 0 : index
    %26 = vector.load %arg8[%c0_25, %c0_26] : memref<8x128xf32, #tpu.memory_space<vmem>>, vector<8x128xf32>
    tpu.vector_store %arg8[%c0_25, %c0_26], %25 {strides = array<i32>} : memref<8x128xf32, #tpu.memory_space<vmem>>, vector<8x128xf32>,
    return
  }
  func.func @transform_0(%arg0: i32) -> (i32, i32) {
    %c0_i32 = arith.constant 0 : i32
    %c0_i32_0 = arith.constant 0 : i32
    return %arg0, %c0_i32 : i32, i32
  }
  func.func @transform_1(%arg0: i32) -> (i32, i32) {
    %c0_i32 = arith.constant 0 : i32
    %c0_i32_0 = arith.constant 0 : i32
    %c0_i32_1 = arith.constant 0 : i32
    return %c0_i32, %c0_i32_0 : i32, i32
  }
  func.func @transform_2(%arg0: i32) -> (i32, i32) {
    %c0_i32 = arith.constant 0 : i32
    %c0_i32_0 = arith.constant 0 : i32
    %c0_i32_1 = arith.constant 0 : i32
    return %c0_i32, %c0_i32_0 : i32, i32
  }
  func.func @transform_3(%arg0: i32) -> (i32, i32) {
    %c0_i32 = arith.constant 0 : i32
    %c0_i32_0 = arith.constant 0 : i32
    %c0_i32_1 = arith.constant 0 : i32
    return %c0_i32, %c0_i32_0 : i32, i32
  }
  func.func @transform_4(%arg0: i32) -> (i32, i32) {
    %c0_i32 = arith.constant 0 : i32
    %c0_i32_0 = arith.constant 0 : i32
    %c0_i32_1 = arith.constant 0 : i32
    return %c0_i32, %c0_i32_0 : i32, i32
  }
  func.func @transform_5(%arg0: i32) -> (i32, i32) {
    %c0_i32 = arith.constant 0 : i32
    %c0_i32_0 = arith.constant 0 : i32
    %c0_i32_1 = arith.constant 0 : i32
    return %c0_i32, %c0_i32_0 : i32, i32
  }
  func.func @transform_6(%arg0: i32) -> (i32, i32) {
    %c0_i32 = arith.constant 0 : i32
    %c0_i32_0 = arith.constant 0 : i32
    %c0_i32_1 = arith.constant 0 : i32
    return %c0_i32, %c0_i32_0 : i32, i32
  }
  func.func @transform_7(%arg0: i32) -> (i32, i32) {
    %c0_i32 = arith.constant 0 : i32
    %c0_i32_0 = arith.constant 0 : i32
    return %arg0, %c0_i32 : i32, i32
  }
}

</mosaic_0001>

<llo_original>
// kernel: tpu_custom_call.1
$region0: #{tpu_custom_call.1}
  #allocation0 [shape = 'u32[]', space=smem, size = 0x4, offset = 0x4, fixed_abs, tag = 'smem constant byte address 0x4 - core index']
  #allocation1 [shape = 'u32[72,128]{1,0:T(1,128)}', space=vmem, size = 0x9000, scoped, tag = 'internal scratch']
  #allocation2 [shape = 'f32[8,128]{1,0:T(8,128)}', space=vmem, size = 0x1000, scoped, tag = 'scratch operand']
  %s0 = inlined_call_operand.hbm [shape: bf16[8,128], index: 0, kind: input, shape index: {}]
  %s1 = inlined_call_operand.hbm [shape: bf16[128,128], index: 1, kind: input, shape index: {}]
  %s2 = inlined_call_operand.vmem [shape: f32[1,128], index: 2, kind: input, shape index: {}]
  %s3 = inlined_call_operand.hbm [shape: bf16[128,128], index: 3, kind: input, shape index: {}]
  %s4 = inlined_call_operand.vmem [shape: f32[1,128], index: 4, kind: input, shape index: {}]
  %s5 = inlined_call_operand.hbm [shape: bf16[128,128], index: 5, kind: input, shape index: {}]
  %s6 = inlined_call_operand.vmem [shape: f32[1,128], index: 6, kind: input, shape index: {}]
  %s7 = inlined_call_operand.hbm [shape: f32[8,128], index: 7, kind: output, shape index: {}]
  %s8 = sld [smem:[#allocation0]]
  $region54: #{tpu_custom_call.1} parent=0
    _
  %s10 = ssub.s32 1, %s8
  %s11 = scalar_select 0, %s10, %s8
  $region1: #{tpu_custom_call.1} parent=0
    #allocation3 [shape = 'u8[2048]{0}', space=vmem, size = 0x800, scoped, tag = 'input window, operand 0, single buffered']
    #allocation4 [shape = 's32[1]{0}', space=sflag, size = 0x4, scoped, tag = 'scoped memory for tpu_custom_call.1']
    #allocation5 [shape = 's32[1]{0}', space=sflag, size = 0x4, scoped, tag = 'scoped memory for tpu_custom_call.1']
    #allocation6 [shape = 'u8[32768]{0}', space=vmem, size = 0x8000, scoped, tag = 'input window, operand 1, single buffered']
    #allocation7 [shape = 's32[1]{0}', space=sflag, size = 0x4, scoped, tag = 'scoped memory for tpu_custom_call.1']
    #allocation8 [shape = 'u8[32768]{0}', space=vmem, size = 0x8000, scoped, tag = 'input window, operand 3, single buffered']
    #allocation9 [shape = 'u8[32768]{0}', space=vmem, size = 0x8000, scoped, tag = 'input window, operand 5, single buffered']
    #allocation10 [shape = 's32[1]{0}', space=sflag, size = 0x4, scoped, tag = 'scoped memory for tpu_custom_call.1']
    #allocation11 [shape = 'u8[4096]{0}', space=vmem, size = 0x1000, scoped, tag = 'output window, operand 0, single buffered']
    %12 = vsyncpa [#allocation4], 0
    %13 = vsyncpa [#allocation7], 0
    %14 = vsyncpa [#allocation10], 0
    %15 = vsyncpa [#allocation5], 0
    // Predicated region
    $region2: #{tpu_custom_call.1} parent=1 // pred_check
      _
    $region3: #{tpu_custom_call.1} parent=1 // pred_check_branch
      %17 = sbr.rel (0) target = $region5
    $region4: #{tpu_custom_call.1} parent=1 // pred_region
      %19 = vsyncadd [#allocation4], 0
      %s21 = sshll.u32 %s0, 4
      %s22 = int_to_ptr.hbm [resolvable:$true] %s21
      %s23 = sshll.u32 [#allocation3], 4
      %s24 = int_to_ptr.vmem [resolvable:$true] %s23
      %26 = dma.hbm_to_vmem [thread:$0]  %s22, 64, %s24, [#allocation4]
    $region5: #{tpu_custom_call.1} parent=1 // pred_fallthru
      _
    // Predicated region
    $region6: #{tpu_custom_call.1} parent=1 // pred_check
      _
    $region7: #{tpu_custom_call.1} parent=1 // pred_check_branch
      %28 = sbr.rel (0) target = $region9
    $region8: #{tpu_custom_call.1} parent=1 // pred_region
      %30 = vsyncadd [#allocation7], 0
      %s31 = sshll.u32 %s1, 4
      %s32 = int_to_ptr.hbm [resolvable:$true] %s31
      %s33 = sshll.u32 [#allocation6], 4
      %s34 = int_to_ptr.vmem [resolvable:$true] %s33
      %39 = dma.hbm_to_vmem [thread:$0]  %s32, 1024, %s34, [#allocation7], 64, 64, 4
    $region9: #{tpu_custom_call.1} parent=1 // pred_fallthru
      _
    // Predicated region
    $region10: #{tpu_custom_call.1} parent=1 // pred_check
      _
    $region11: #{tpu_custom_call.1} parent=1 // pred_check_branch
      %41 = sbr.rel (0) target = $region13
    $region12: #{tpu_custom_call.1} parent=1 // pred_region
      _
    $region13: #{tpu_custom_call.1} parent=1 // pred_fallthru
      _
    // Predicated region
    $region14: #{tpu_custom_call.1} parent=1 // pred_check
      _
    $region15: #{tpu_custom_call.1} parent=1 // pred_check_branch
      %43 = sbr.rel (0) target = $region17
    $region16: #{tpu_custom_call.1} parent=1 // pred_region
      %45 = vsyncadd [#allocation7], 0
      %s46 = sshll.u32 %s3, 4
      %s47 = int_to_ptr.hbm [resolvable:$true] %s46
      %s48 = sshll.u32 [#allocation8], 4
      %s49 = int_to_ptr.vmem [resolvable:$true] %s48
      %54 = dma.hbm_to_vmem [thread:$0]  %s47, 1024, %s49, [#allocation7], 64, 64, 4
    $region17: #{tpu_custom_call.1} parent=1 // pred_fallthru
      _
    // Predicated region
    $region18: #{tpu_custom_call.1} parent=1 // pred_check
      _
    $region19: #{tpu_custom_call.1} parent=1 // pred_check_branch
      %56 = sbr.rel (0) target = $region21
    $region20: #{tpu_custom_call.1} parent=1 // pred_region
      _
    $region21: #{tpu_custom_call.1} parent=1 // pred_fallthru
      _
    // Predicated region
    $region22: #{tpu_custom_call.1} parent=1 // pred_check
      _
    $region23: #{tpu_custom_call.1} parent=1 // pred_check_branch
      %58 = sbr.rel (0) target = $region25
    $region24: #{tpu_custom_call.1} parent=1 // pred_region
      %60 = vsyncadd [#allocation10], 0
      %s61 = sshll.u32 %s5, 4
      %s62 = int_to_ptr.hbm [resolvable:$true] %s61
      %s63 = sshll.u32 [#allocation9], 4
      %s64 = int_to_ptr.vmem [resolvable:$true] %s63
      %69 = dma.hbm_to_vmem [thread:$0]  %s62, 1024, %s64, [#allocation10], 64, 64, 4
    $region25: #{tpu_custom_call.1} parent=1 // pred_fallthru
      _
    // Predicated region
    $region26: #{tpu_custom_call.1} parent=1 // pred_check
      _
    $region27: #{tpu_custom_call.1} parent=1 // pred_check_branch
      %71 = sbr.rel (0) target = $region29
    $region28: #{tpu_custom_call.1} parent=1 // pred_region
      _
    $region29: #{tpu_custom_call.1} parent=1 // pred_fallthru
      _
    // Predicated region
    $region30: #{tpu_custom_call.1} parent=1 // pred_check
      _
    $region31: #{tpu_custom_call.1} parent=1 // pred_check_branch
      %73 = sbr.rel (0) target = $region33
    $region32: #{tpu_custom_call.1} parent=1 // pred_region
      %75 = dma.done [#allocation4], 64
    $region33: #{tpu_custom_call.1} parent=1 // pred_fallthru
      _
    // Predicated region
    $region34: #{tpu_custom_call.1} parent=1 // pred_check
      _
    $region35: #{tpu_custom_call.1} parent=1 // pred_check_branch
      %77 = sbr.rel (0) target = $region37
    $region36: #{tpu_custom_call.1} parent=1 // pred_region
      %79 = dma.done [#allocation7], 1024
    $region37: #{tpu_custom_call.1} parent=1 // pred_fallthru
      _
    // Predicated region
    $region38: #{tpu_custom_call.1} parent=1 // pred_check
      _
    $region39: #{tpu_custom_call.1} parent=1 // pred_check_branch
      %81 = sbr.rel (0) target = $region41
    $region40: #{tpu_custom_call.1} parent=1 // pred_region
      %83 = dma.done [#allocation7], 1024
    $region41: #{tpu_custom_call.1} parent=1 // pred_fallthru
      _
    // Predicated region
    $region42: #{tpu_custom_call.1} parent=1 // pred_check
      _
    $region43: #{tpu_custom_call.1} parent=1 // pred_check_branch
      %85 = sbr.rel (0) target = $region45
    $region44: #{tpu_custom_call.1} parent=1 // pred_region
      %87 = dma.done [#allocation10], 1024
    $region45: #{tpu_custom_call.1} parent=1 // pred_fallthru
      _
    %v88 = vld [vmem:[#allocation3] sm:$0xf]
    %v89 = vld [vmem:[#allocation6] sm:$0xf]
    %v90 = vld [vmem:[#allocation6 + $0x4] sm:$0xf]
    %v91 = vld [vmem:[#allocation6 + $0x8] sm:$0xf]
    %v92 = vld [vmem:[#allocation6 + $0xc] sm:$0xf]
    %v93 = vld [vmem:[#allocation6 + $0x10] sm:$0xf]
    %v94 = vld [vmem:[#allocation6 + $0x14] sm:$0xf]
    %v95 = vld [vmem:[#allocation6 + $0x18] sm:$0xf]
    %v96 = vld [vmem:[#allocation6 + $0x1c] sm:$0xf]
    %v97 = vld [vmem:[#allocation6 + $0x20] sm:$0xf]
    %v98 = vld [vmem:[#allocation6 + $0x24] sm:$0xf]
    %v99 = vld [vmem:[#allocation6 + $0x28] sm:$0xf]
    %v100 = vld [vmem:[#allocation6 + $0x2c] sm:$0xf]
    %v101 = vld [vmem:[#allocation6 + $0x30] sm:$0xf]
    %v102 = vld [vmem:[#allocation6 + $0x34] sm:$0xf]
    %v103 = vld [vmem:[#allocation6 + $0x38] sm:$0xf]
    %v104 = vld [vmem:[#allocation6 + $0x3c] sm:$0xf]
    %v105 = vld [vmem:[%s2] sm:$0x1]
    %v107 = vperm.slane %v105, 0
    %v125 = vunpack.c.l.b16 %v89
    %v126 = vunpack.c.l.b16 %v90
    %v127 = vunpack.c.l.b16 %v91
    %v128 = vunpack.c.l.b16 %v92
    %v129 = vunpack.c.l.b16 %v93
    %v130 = vunpack.c.l.b16 %v94
    %v131 = vunpack.c.l.b16 %v95
    %v132 = vunpack.c.l.b16 %v96
    %v133 = vunpack.c.l.b16 %v97
    %v134 = vunpack.c.l.b16 %v98
    %v135 = vunpack.c.l.b16 %v99
    %v136 = vunpack.c.l.b16 %v100
    %v137 = vunpack.c.l.b16 %v101
    %v138 = vunpack.c.l.b16 %v102
    %v139 = vunpack.c.l.b16 %v103
    %v140 = vunpack.c.l.b16 %v104
    %v141 = vpack.c.b16 %v126, %v125
    %v142 = vpack.c.b16 %v128, %v127
    %v143 = vpack.c.b16 %v130, %v129
    %v144 = vpack.c.b16 %v132, %v131
    %v145 = vpack.c.b16 %v134, %v133
    %v146 = vpack.c.b16 %v136, %v135
    %v147 = vpack.c.b16 %v138, %v137
    %v148 = vpack.c.b16 %v140, %v139
    %157 = vmatpush.bf16.msra.mxu0 %v148
    %158 = vmatpush.bf16.msra.mxu0 %v147
    %159 = vmatpush.bf16.msra.mxu0 %v146
    %160 = vmatpush.bf16.msra.mxu0 %v145
    %161 = vmatpush.bf16.msra.mxu0 %v144
    %162 = vmatpush.bf16.msra.mxu0 %v143
    %163 = vmatpush.bf16.msra.mxu0 %v142
    %164 = vmatpush.bf16.msra.mxu0 %v141
    %165 = vmatmul.bf16.gmra.mxu0 %v88
    %v166 = vpop.f32.mrf.mxu0
    %v167 = vadd.f32 %v107, %v166
    %v168 = vpop.f32.mrf.mxu0
    %169 = vdwg.mxu0
    %v170 = vmax.f32 %v167, 0.0
    %171 = vst [vmem:[#allocation2] sm:$0xff] %v170
    %v172 = vld [vmem:[#allocation2] sm:$0xff]
    %v173 = vpack.c.bf16 %v172, %v172
    %v174 = vld [vmem:[#allocation8] sm:$0xf]
    %v175 = vld [vmem:[#allocation8 + $0x4] sm:$0xf]
    %v176 = vld [vmem:[#allocation8 + $0x8] sm:$0xf]
    %v177 = vld [vmem:[#allocation8 + $0xc] sm:$0xf]
    %v178 = vld [vmem:[#allocation8 + $0x10] sm:$0xf]
    %v179 = vld [vmem:[#allocation8 + $0x14] sm:$0xf]
    %v180 = vld [vmem:[#allocation8 + $0x18] sm:$0xf]
    %v181 = vld [vmem:[#allocation8 + $0x1c] sm:$0xf]
    %v182 = vld [vmem:[#allocation8 + $0x20] sm:$0xf]
    %v183 = vld [vmem:[#allocation8 + $0x24] sm:$0xf]
    %v184 = vld [vmem:[#allocation8 + $0x28] sm:$0xf]
    %v185 = vld [vmem:[#allocation8 + $0x2c] sm:$0xf]
    %v186 = vld [vmem:[#allocation8 + $0x30] sm:$0xf]
    %v187 = vld [vmem:[#allocation8 + $0x34] sm:$0xf]
    %v188 = vld [vmem:[#allocation8 + $0x38] sm:$0xf]
    %v189 = vld [vmem:[#allocation8 + $0x3c] sm:$0xf]
    %v190 = vld [vmem:[%s4] sm:$0x1]
    %v192 = vperm.slane %v190, 0
    %v210 = vunpack.c.l.b16 %v174
    %v211 = vunpack.c.l.b16 %v175
    %v212 = vunpack.c.l.b16 %v176
    %v213 = vunpack.c.l.b16 %v177
    %v214 = vunpack.c.l.b16 %v178
    %v215 = vunpack.c.l.b16 %v179
    %v216 = vunpack.c.l.b16 %v180
    %v217 = vunpack.c.l.b16 %v181
    %v218 = vunpack.c.l.b16 %v182
    %v219 = vunpack.c.l.b16 %v183
    %v220 = vunpack.c.l.b16 %v184
    %v221 = vunpack.c.l.b16 %v185
    %v222 = vunpack.c.l.b16 %v186
    %v223 = vunpack.c.l.b16 %v187
    %v224 = vunpack.c.l.b16 %v188
    %v225 = vunpack.c.l.b16 %v189
    %v226 = vpack.c.b16 %v211, %v210
    %v227 = vpack.c.b16 %v213, %v212
    %v228 = vpack.c.b16 %v215, %v214
    %v229 = vpack.c.b16 %v217, %v216
    %v230 = vpack.c.b16 %v219, %v218
    %v231 = vpack.c.b16 %v221, %v220
    %v232 = vpack.c.b16 %v223, %v222
    %v233 = vpack.c.b16 %v225, %v224
    %242 = vmatpush.bf16.msra.mxu0 %v233
    %243 = vmatpush.bf16.msra.mxu0 %v232
    %244 = vmatpush.bf16.msra.mxu0 %v231
    %245 = vmatpush.bf16.msra.mxu0 %v230
    %246 = vmatpush.bf16.msra.mxu0 %v229
    %247 = vmatpush.bf16.msra.mxu0 %v228
    %248 = vmatpush.bf16.msra.mxu0 %v227
    %249 = vmatpush.bf16.msra.mxu0 %v226
    %250 = vmatmul.bf16.gmra.mxu0 %v173
    %v251 = vpop.f32.mrf.mxu0
    %v252 = vadd.f32 %v192, %v251
    %v253 = vpop.f32.mrf.mxu0
    %254 = vdwg.mxu0
    %v255 = vmax.f32 %v252, 0.0
    %256 = vst [vmem:[#allocation2] sm:$0xff] %v255
    %v257 = vld [vmem:[#allocation2] sm:$0xff]
    %v258 = vpack.c.bf16 %v257, %v257
    %v259 = vld [vmem:[#allocation9] sm:$0xf]
    %v260 = vld [vmem:[#allocation9 + $0x4] sm:$0xf]
    %v261 = vld [vmem:[#allocation9 + $0x8] sm:$0xf]
    %v262 = vld [vmem:[#allocation9 + $0xc] sm:$0xf]
    %v263 = vld [vmem:[#allocation9 + $0x10] sm:$0xf]
    %v264 = vld [vmem:[#allocation9 + $0x14] sm:$0xf]
    %v265 = vld [vmem:[#allocation9 + $0x18] sm:$0xf]
    %v266 = vld [vmem:[#allocation9 + $0x1c] sm:$0xf]
    %v267 = vld [vmem:[#allocation9 + $0x20] sm:$0xf]
    %v268 = vld [vmem:[#allocation9 + $0x24] sm:$0xf]
    %v269 = vld [vmem:[#allocation9 + $0x28] sm:$0xf]
    %v270 = vld [vmem:[#allocation9 + $0x2c] sm:$0xf]
    %v271 = vld [vmem:[#allocation9 + $0x30] sm:$0xf]
    %v272 = vld [vmem:[#allocation9 + $0x34] sm:$0xf]
    %v273 = vld [vmem:[#allocation9 + $0x38] sm:$0xf]
    %v274 = vld [vmem:[#allocation9 + $0x3c] sm:$0xf]
    %v275 = vld [vmem:[%s6] sm:$0x1]
    %v277 = vperm.slane %v275, 0
    %v295 = vunpack.c.l.b16 %v259
    %v296 = vunpack.c.l.b16 %v260
    %v297 = vunpack.c.l.b16 %v261
    %v298 = vunpack.c.l.b16 %v262
    %v299 = vunpack.c.l.b16 %v263
    %v300 = vunpack.c.l.b16 %v264
    %v301 = vunpack.c.l.b16 %v265
    %v302 = vunpack.c.l.b16 %v266
    %v303 = vunpack.c.l.b16 %v267
    %v304 = vunpack.c.l.b16 %v268
    %v305 = vunpack.c.l.b16 %v269
    %v306 = vunpack.c.l.b16 %v270
    %v307 = vunpack.c.l.b16 %v271
    %v308 = vunpack.c.l.b16 %v272
    %v309 = vunpack.c.l.b16 %v273
    %v310 = vunpack.c.l.b16 %v274
    %v311 = vpack.c.b16 %v296, %v295
    %v312 = vpack.c.b16 %v298, %v297
    %v313 = vpack.c.b16 %v300, %v299
    %v314 = vpack.c.b16 %v302, %v301
    %v315 = vpack.c.b16 %v304, %v303
    %v316 = vpack.c.b16 %v306, %v305
    %v317 = vpack.c.b16 %v308, %v307
    %v318 = vpack.c.b16 %v310, %v309
    %327 = vmatpush.bf16.msra.mxu0 %v318
    %328 = vmatpush.bf16.msra.mxu0 %v317
    %329 = vmatpush.bf16.msra.mxu0 %v316
    %330 = vmatpush.bf16.msra.mxu0 %v315
    %331 = vmatpush.bf16.msra.mxu0 %v314
    %332 = vmatpush.bf16.msra.mxu0 %v313
    %333 = vmatpush.bf16.msra.mxu0 %v312
    %334 = vmatpush.bf16.msra.mxu0 %v311
    %335 = vmatmul.bf16.gmra.mxu0 %v258
    %v336 = vpop.f32.mrf.mxu0
    %v337 = vadd.f32 %v277, %v336
    %v338 = vpop.f32.mrf.mxu0
    %339 = vdwg.mxu0
    %340 = vst [vmem:[#allocation11] sm:$0xff] %v337
    // Predicated region
    $region46: #{tpu_custom_call.1} parent=1 // pred_check
      _
    $region47: #{tpu_custom_call.1} parent=1 // pred_check_branch
      %342 = sbr.rel (0) target = $region49
    $region48: #{tpu_custom_call.1} parent=1 // pred_region
      %344 = vsyncadd [#allocation5], 0
      %s346 = sshll.u32 [#allocation11], 4
      %s347 = int_to_ptr.vmem [resolvable:$true] %s346
      %s348 = sshll.u32 %s7, 4
      %s349 = int_to_ptr.hbm [resolvable:$true] %s348
      %351 = dma.vmem_to_hbm [thread:$0]  %s347, 128, %s349, [#allocation5]
    $region49: #{tpu_custom_call.1} parent=1 // pred_fallthru
      _
    // Predicated region
    $region50: #{tpu_custom_call.1} parent=1 // pred_check
      _
    $region51: #{tpu_custom_call.1} parent=1 // pred_check_branch
      %353 = sbr.rel (0) target = $region53
    $region52: #{tpu_custom_call.1} parent=1 // pred_region
      %355 = dma.done [#allocation5], 128
    $region53: #{tpu_custom_call.1} parent=1 // pred_fallthru
      _
    %356 = vsyncpa [#allocation4], 1
    %357 = vsyncpa [#allocation7], 1
    %358 = vsyncpa [#allocation10], 1
    %359 = vsyncpa [#allocation5], 1

// kernel: tpu_custom_call.1
$region0: #{tpu_custom_call.1}
  #allocation0 [shape = 'u32[]', space=smem, size = 0x4, offset = 0x4, fixed_abs, tag = 'smem constant byte address 0x4 - core index']
  #allocation1 [shape = 'u32[72,128]{1,0:T(1,128)}', space=vmem, size = 0x9000, scoped, tag = 'internal scratch']
  #allocation2 [shape = 'f32[8,128]{1,0:T(8,128)}', space=vmem, size = 0x1000, scoped, tag = 'scratch operand']
  %s0 = inlined_call_operand.hbm [shape: bf16[8,128], index: 0, kind: input, shape index: {}]
  %s1 = inlined_call_operand.hbm [shape: bf16[128,128], index: 1, kind: input, shape index: {}]
  %s2 = inlined_call_operand.vmem [shape: f32[1,128], index: 2, kind: input, shape index: {}]
  %s3 = inlined_call_operand.hbm [shape: bf16[128,128], index: 3, kind: input, shape index: {}]
  %s4 = inlined_call_operand.vmem [shape: f32[1,128], index: 4, kind: input, shape index: {}]
  %s5 = inlined_call_operand.hbm [shape: bf16[128,128], index: 5, kind: input, shape index: {}]
  %s6 = inlined_call_operand.vmem [shape: f32[1,128], index: 6, kind: input, shape index: {}]
  %s7 = inlined_call_operand.hbm [shape: f32[8,128], index: 7, kind: output, shape index: {}]
  %s8 = sld [smem:[#allocation0]]
  $region54: #{tpu_custom_call.1} parent=0
    _
  %s10 = ssub.s32 1, %s8
  %s11 = scalar_select 0, %s10, %s8
  $region1: #{tpu_custom_call.1} parent=0
    #allocation3 [shape = 'u8[2048]{0}', space=vmem, size = 0x800, scoped, tag = 'input window, operand 0, single buffered']
    #allocation4 [shape = 's32[1]{0}', space=sflag, size = 0x4, scoped, tag = 'scoped memory for tpu_custom_call.1']
    #allocation5 [shape = 's32[1]{0}', space=sflag, size = 0x4, scoped, tag = 'scoped memory for tpu_custom_call.1']
    #allocation6 [shape = 'u8[32768]{0}', space=vmem, size = 0x8000, scoped, tag = 'input window, operand 1, single buffered']
    #allocation7 [shape = 's32[1]{0}', space=sflag, size = 0x4, scoped, tag = 'scoped memory for tpu_custom_call.1']
    #allocation8 [shape = 'u8[32768]{0}', space=vmem, size = 0x8000, scoped, tag = 'input window, operand 3, single buffered']
    #allocation9 [shape = 'u8[32768]{0}', space=vmem, size = 0x8000, scoped, tag = 'input window, operand 5, single buffered']
    #allocation10 [shape = 's32[1]{0}', space=sflag, size = 0x4, scoped, tag = 'scoped memory for tpu_custom_call.1']
    #allocation11 [shape = 'u8[4096]{0}', space=vmem, size = 0x1000, scoped, tag = 'output window, operand 0, single buffered']
    %12 = vsyncpa [#allocation4], 0
    %13 = vsyncpa [#allocation7], 0
    %14 = vsyncpa [#allocation10], 0
    %15 = vsyncpa [#allocation5], 0
    // Predicated region
    $region2: #{tpu_custom_call.1} parent=1 // pred_check
      _
    $region3: #{tpu_custom_call.1} parent=1 // pred_check_branch
      %17 = sbr.rel (0) target = $region5
    $region4: #{tpu_custom_call.1} parent=1 // pred_region
      %19 = vsyncadd [#allocation4], 0
      %s21 = sshll.u32 %s0, 4
      %s22 = int_to_ptr.hbm [resolvable:$true] %s21
      %s23 = sshll.u32 [#allocation3], 4
      %s24 = int_to_ptr.vmem [resolvable:$true] %s23
      %26 = dma.hbm_to_vmem [thread:$0]  %s22, 64, %s24, [#allocation4]
    $region5: #{tpu_custom_call.1} parent=1 // pred_fallthru
      _
    // Predicated region
    $region6: #{tpu_custom_call.1} parent=1 // pred_check
      _
    $region7: #{tpu_custom_call.1} parent=1 // pred_check_branch
      %28 = sbr.rel (0) target = $region9
    $region8: #{tpu_custom_call.1} parent=1 // pred_region
      %30 = vsyncadd [#allocation7], 0
      %s31 = sshll.u32 %s1, 4
      %s32 = int_to_ptr.hbm [resolvable:$true] %s31
      %s33 = sshll.u32 [#allocation6], 4
      %s34 = int_to_ptr.vmem [resolvable:$true] %s33
      %39 = dma.hbm_to_vmem [thread:$0]  %s32, 1024, %s34, [#allocation7], 64, 64, 4
    $region9: #{tpu_custom_call.1} parent=1 // pred_fallthru
      _
    // Predicated region
    $region10: #{tpu_custom_call.1} parent=1 // pred_check
      _
    $region11: #{tpu_custom_call.1} parent=1 // pred_check_branch
      %41 = sbr.rel (0) target = $region13
    $region12: #{tpu_custom_call.1} parent=1 // pred_region
      _
    $region13: #{tpu_custom_call.1} parent=1 // pred_fallthru
      _
    // Predicated region
    $region14: #{tpu_custom_call.1} parent=1 // pred_check
      _
    $region15: #{tpu_custom_call.1} parent=1 // pred_check_branch
      %43 = sbr.rel (0) target = $region17
    $region16: #{tpu_custom_call.1} parent=1 // pred_region
      %45 = vsyncadd [#allocation7], 0
      %s46 = sshll.u32 %s3, 4
      %s47 = int_to_ptr.hbm [resolvable:$true] %s46
      %s48 = sshll.u32 [#allocation8], 4
      %s49 = int_to_ptr.vmem [resolvable:$true] %s48
      %54 = dma.hbm_to_vmem [thread:$0]  %s47, 1024, %s49, [#allocation7], 64, 64, 4
    $region17: #{tpu_custom_call.1} parent=1 // pred_fallthru
      _
    // Predicated region
    $region18: #{tpu_custom_call.1} parent=1 // pred_check
      _
    $region19: #{tpu_custom_call.1} parent=1 // pred_check_branch
      %56 = sbr.rel (0) target = $region21
    $region20: #{tpu_custom_call.1} parent=1 // pred_region
      _
    $region21: #{tpu_custom_call.1} parent=1 // pred_fallthru
      _
    // Predicated region
    $region22: #{tpu_custom_call.1} parent=1 // pred_check
      _
    $region23: #{tpu_custom_call.1} parent=1 // pred_check_branch
      %58 = sbr.rel (0) target = $region25
    $region24: #{tpu_custom_call.1} parent=1 // pred_region
      %60 = vsyncadd [#allocation10], 0
      %s61 = sshll.u32 %s5, 4
      %s62 = int_to_ptr.hbm [resolvable:$true] %s61
      %s63 = sshll.u32 [#allocation9], 4
      %s64 = int_to_ptr.vmem [resolvable:$true] %s63
      %69 = dma.hbm_to_vmem [thread:$0]  %s62, 1024, %s64, [#allocation10], 64, 64, 4
    $region25: #{tpu_custom_call.1} parent=1 // pred_fallthru
      _
    // Predicated region
    $region26: #{tpu_custom_call.1} parent=1 // pred_check
      _
    $region27: #{tpu_custom_call.1} parent=1 // pred_check_branch
      %71 = sbr.rel (0) target = $region29
    $region28: #{tpu_custom_call.1} parent=1 // pred_region
      _
    $region29: #{tpu_custom_call.1} parent=1 // pred_fallthru
      _
    // Predicated region
    $region30: #{tpu_custom_call.1} parent=1 // pred_check
      _
    $region31: #{tpu_custom_call.1} parent=1 // pred_check_branch
      %73 = sbr.rel (0) target = $region33
    $region32: #{tpu_custom_call.1} parent=1 // pred_region
      %75 = dma.done [#allocation4], 64
    $region33: #{tpu_custom_call.1} parent=1 // pred_fallthru
      _
    // Predicated region
    $region34: #{tpu_custom_call.1} parent=1 // pred_check
      _
    $region35: #{tpu_custom_call.1} parent=1 // pred_check_branch
      %77 = sbr.rel (0) target = $region37
    $region36: #{tpu_custom_call.1} parent=1 // pred_region
      %79 = dma.done [#allocation7], 1024
    $region37: #{tpu_custom_call.1} parent=1 // pred_fallthru
      _
    // Predicated region
    $region38: #{tpu_custom_call.1} parent=1 // pred_check
      _
    $region39: #{tpu_custom_call.1} parent=1 // pred_check_branch
      %81 = sbr.rel (0) target = $region41
    $region40: #{tpu_custom_call.1} parent=1 // pred_region
      %83 = dma.done [#allocation7], 1024
    $region41: #{tpu_custom_call.1} parent=1 // pred_fallthru
      _
    // Predicated region
    $region42: #{tpu_custom_call.1} parent=1 // pred_check
      _
    $region43: #{tpu_custom_call.1} parent=1 // pred_check_branch
      %85 = sbr.rel (0) target = $region45
    $region44: #{tpu_custom_call.1} parent=1 // pred_region
      %87 = dma.done [#allocation10], 1024
    $region45: #{tpu_custom_call.1} parent=1 // pred_fallthru
      _
    %v88 = vld [vmem:[#allocation3] sm:$0xf]
    %v89 = vld [vmem:[#allocation6] sm:$0xf]
    %v90 = vld [vmem:[#allocation6 + $0x4] sm:$0xf]
    %v91 = vld [vmem:[#allocation6 + $0x8] sm:$0xf]
    %v92 = vld [vmem:[#allocation6 + $0xc] sm:$0xf]
    %v93 = vld [vmem:[#allocation6 + $0x10] sm:$0xf]
    %v94 = vld [vmem:[#allocation6 + $0x14] sm:$0xf]
    %v95 = vld [vmem:[#allocation6 + $0x18] sm:$0xf]
    %v96 = vld [vmem:[#allocation6 + $0x1c] sm:$0xf]
    %v97 = vld [vmem:[#allocation6 + $0x20] sm:$0xf]
    %v98 = vld [vmem:[#allocation6 + $0x24] sm:$0xf]
    %v99 = vld [vmem:[#allocation6 + $0x28] sm:$0xf]
    %v100 = vld [vmem:[#allocation6 + $0x2c] sm:$0xf]
    %v101 = vld [vmem:[#allocation6 + $0x30] sm:$0xf]
    %v102 = vld [vmem:[#allocation6 + $0x34] sm:$0xf]
    %v103 = vld [vmem:[#allocation6 + $0x38] sm:$0xf]
    %v104 = vld [vmem:[#allocation6 + $0x3c] sm:$0xf]
    %v105 = vld [vmem:[%s2] sm:$0x1]
    %v107 = vperm.slane %v105, 0
    %v125 = vunpack.c.l.b16 %v89
    %v126 = vunpack.c.l.b16 %v90
    %v127 = vunpack.c.l.b16 %v91
    %v128 = vunpack.c.l.b16 %v92
    %v129 = vunpack.c.l.b16 %v93
    %v130 = vunpack.c.l.b16 %v94
    %v131 = vunpack.c.l.b16 %v95
    %v132 = vunpack.c.l.b16 %v96
    %v133 = vunpack.c.l.b16 %v97
    %v134 = vunpack.c.l.b16 %v98
    %v135 = vunpack.c.l.b16 %v99
    %v136 = vunpack.c.l.b16 %v100
    %v137 = vunpack.c.l.b16 %v101
    %v138 = vunpack.c.l.b16 %v102
    %v139 = vunpack.c.l.b16 %v103
    %v140 = vunpack.c.l.b16 %v104
    %v141 = vpack.c.b16 %v126, %v125
    %v142 = vpack.c.b16 %v128, %v127
    %v143 = vpack.c.b16 %v130, %v129
    %v144 = vpack.c.b16 %v132, %v131
    %v145 = vpack.c.b16 %v134, %v133
    %v146 = vpack.c.b16 %v136, %v135
    %v147 = vpack.c.b16 %v138, %v137
    %v148 = vpack.c.b16 %v140, %v139
    %157 = vmatpush.bf16.msra.mxu0 %v148
    %158 = vmatpush.bf16.msra.mxu0 %v147
    %159 = vmatpush.bf16.msra.mxu0 %v146
    %160 = vmatpush.bf16.msra.mxu0 %v145
    %161 = vmatpush.bf16.msra.mxu0 %v144
    %162 = vmatpush.bf16.msra.mxu0 %v143
    %163 = vmatpush.bf16.msra.mxu0 %v142
    %164 = vmatpush.bf16.msra.mxu0 %v141
    %165 = vmatmul.bf16.gmra.mxu0 %v88
    %v166 = vpop.f32.mrf.mxu0
    %v167 = vadd.f32 %v107, %v166
    %v168 = vpop.f32.mrf.mxu0
    %169 = vdwg.mxu0
    %v170 = vmax.f32 %v167, 0.0
    %171 = vst [vmem:[#allocation2] sm:$0xff] %v170
    %v172 = vld [vmem:[#allocation2] sm:$0xff]
    %v173 = vpack.c.bf16 %v172, %v172
    %v174 = vld [vmem:[#allocation8] sm:$0xf]
    %v175 = vld [vmem:[#allocation8 + $0x4] sm:$0xf]
    %v176 = vld [vmem:[#allocation8 + $0x8] sm:$0xf]
    %v177 = vld [vmem:[#allocation8 + $0xc] sm:$0xf]
    %v178 = vld [vmem:[#allocation8 + $0x10] sm:$0xf]
    %v179 = vld [vmem:[#allocation8 + $0x14] sm:$0xf]
    %v180 = vld [vmem:[#allocation8 + $0x18] sm:$0xf]
    %v181 = vld [vmem:[#allocation8 + $0x1c] sm:$0xf]
    %v182 = vld [vmem:[#allocation8 + $0x20] sm:$0xf]
    %v183 = vld [vmem:[#allocation8 + $0x24] sm:$0xf]
    %v184 = vld [vmem:[#allocation8 + $0x28] sm:$0xf]
    %v185 = vld [vmem:[#allocation8 + $0x2c] sm:$0xf]
    %v186 = vld [vmem:[#allocation8 + $0x30] sm:$0xf]
    %v187 = vld [vmem:[#allocation8 + $0x34] sm:$0xf]
    %v188 = vld [vmem:[#allocation8 + $0x38] sm:$0xf]
    %v189 = vld [vmem:[#allocation8 + $0x3c] sm:$0xf]
    %v190 = vld [vmem:[%s4] sm:$0x1]
    %v192 = vperm.slane %v190, 0
    %v210 = vunpack.c.l.b16 %v174
    %v211 = vunpack.c.l.b16 %v175
    %v212 = vunpack.c.l.b16 %v176
    %v213 = vunpack.c.l.b16 %v177
    %v214 = vunpack.c.l.b16 %v178
    %v215 = vunpack.c.l.b16 %v179
    %v216 = vunpack.c.l.b16 %v180
    %v217 = vunpack.c.l.b16 %v181
    %v218 = vunpack.c.l.b16 %v182
    %v219 = vunpack.c.l.b16 %v183
    %v220 = vunpack.c.l.b16 %v184
    %v221 = vunpack.c.l.b16 %v185
    %v222 = vunpack.c.l.b16 %v186
    %v223 = vunpack.c.l.b16 %v187
    %v224 = vunpack.c.l.b16 %v188
    %v225 = vunpack.c.l.b16 %v189
    %v226 = vpack.c.b16 %v211, %v210
    %v227 = vpack.c.b16 %v213, %v212
    %v228 = vpack.c.b16 %v215, %v214
    %v229 = vpack.c.b16 %v217, %v216
    %v230 = vpack.c.b16 %v219, %v218
    %v231 = vpack.c.b16 %v221, %v220
    %v232 = vpack.c.b16 %v223, %v222
    %v233 = vpack.c.b16 %v225, %v224
    %242 = vmatpush.bf16.msra.mxu0 %v233
    %243 = vmatpush.bf16.msra.mxu0 %v232
    %244 = vmatpush.bf16.msra.mxu0 %v231
    %245 = vmatpush.bf16.msra.mxu0 %v230
    %246 = vmatpush.bf16.msra.mxu0 %v229
    %247 = vmatpush.bf16.msra.mxu0 %v228
    %248 = vmatpush.bf16.msra.mxu0 %v227
    %249 = vmatpush.bf16.msra.mxu0 %v226
    %250 = vmatmul.bf16.gmra.mxu0 %v173
    %v251 = vpop.f32.mrf.mxu0
    %v252 = vadd.f32 %v192, %v251
    %v253 = vpop.f32.mrf.mxu0
    %254 = vdwg.mxu0
    %v255 = vmax.f32 %v252, 0.0
    %256 = vst [vmem:[#allocation2] sm:$0xff] %v255
    %v257 = vld [vmem:[#allocation2] sm:$0xff]
    %v258 = vpack.c.bf16 %v257, %v257
    %v259 = vld [vmem:[#allocation9] sm:$0xf]
    %v260 = vld [vmem:[#allocation9 + $0x4] sm:$0xf]
    %v261 = vld [vmem:[#allocation9 + $0x8] sm:$0xf]
    %v262 = vld [vmem:[#allocation9 + $0xc] sm:$0xf]
    %v263 = vld [vmem:[#allocation9 + $0x10] sm:$0xf]
    %v264 = vld [vmem:[#allocation9 + $0x14] sm:$0xf]
    %v265 = vld [vmem:[#allocation9 + $0x18] sm:$0xf]
    %v266 = vld [vmem:[#allocation9 + $0x1c] sm:$0xf]
    %v267 = vld [vmem:[#allocation9 + $0x20] sm:$0xf]
    %v268 = vld [vmem:[#allocation9 + $0x24] sm:$0xf]
    %v269 = vld [vmem:[#allocation9 + $0x28] sm:$0xf]
    %v270 = vld [vmem:[#allocation9 + $0x2c] sm:$0xf]
    %v271 = vld [vmem:[#allocation9 + $0x30] sm:$0xf]
    %v272 = vld [vmem:[#allocation9 + $0x34] sm:$0xf]
    %v273 = vld [vmem:[#allocation9 + $0x38] sm:$0xf]
    %v274 = vld [vmem:[#allocation9 + $0x3c] sm:$0xf]
    %v275 = vld [vmem:[%s6] sm:$0x1]
    %v277 = vperm.slane %v275, 0
    %v295 = vunpack.c.l.b16 %v259
    %v296 = vunpack.c.l.b16 %v260
    %v297 = vunpack.c.l.b16 %v261
    %v298 = vunpack.c.l.b16 %v262
    %v299 = vunpack.c.l.b16 %v263
    %v300 = vunpack.c.l.b16 %v264
    %v301 = vunpack.c.l.b16 %v265
    %v302 = vunpack.c.l.b16 %v266
    %v303 = vunpack.c.l.b16 %v267
    %v304 = vunpack.c.l.b16 %v268
    %v305 = vunpack.c.l.b16 %v269
    %v306 = vunpack.c.l.b16 %v270
    %v307 = vunpack.c.l.b16 %v271
    %v308 = vunpack.c.l.b16 %v272
    %v309 = vunpack.c.l.b16 %v273
    %v310 = vunpack.c.l.b16 %v274
    %v311 = vpack.c.b16 %v296, %v295
    %v312 = vpack.c.b16 %v298, %v297
    %v313 = vpack.c.b16 %v300, %v299
    %v314 = vpack.c.b16 %v302, %v301
    %v315 = vpack.c.b16 %v304, %v303
    %v316 = vpack.c.b16 %v306, %v305
    %v317 = vpack.c.b16 %v308, %v307
    %v318 = vpack.c.b16 %v310, %v309
    %327 = vmatpush.bf16.msra.mxu0 %v318
    %328 = vmatpush.bf16.msra.mxu0 %v317
    %329 = vmatpush.bf16.msra.mxu0 %v316
    %330 = vmatpush.bf16.msra.mxu0 %v315
    %331 = vmatpush.bf16.msra.mxu0 %v314
    %332 = vmatpush.bf16.msra.mxu0 %v313
    %333 = vmatpush.bf16.msra.mxu0 %v312
    %334 = vmatpush.bf16.msra.mxu0 %v311
    %335 = vmatmul.bf16.gmra.mxu0 %v258
    %v336 = vpop.f32.mrf.mxu0
    %v337 = vadd.f32 %v277, %v336
    %v338 = vpop.f32.mrf.mxu0
    %339 = vdwg.mxu0
    %340 = vst [vmem:[#allocation11] sm:$0xff] %v337
    // Predicated region
    $region46: #{tpu_custom_call.1} parent=1 // pred_check
      _
    $region47: #{tpu_custom_call.1} parent=1 // pred_check_branch
      %342 = sbr.rel (0) target = $region49
    $region48: #{tpu_custom_call.1} parent=1 // pred_region
      %344 = vsyncadd [#allocation5], 0
      %s346 = sshll.u32 [#allocation11], 4
      %s347 = int_to_ptr.vmem [resolvable:$true] %s346
      %s348 = sshll.u32 %s7, 4
      %s349 = int_to_ptr.hbm [resolvable:$true] %s348
      %351 = dma.vmem_to_hbm [thread:$0]  %s347, 128, %s349, [#allocation5]
    $region49: #{tpu_custom_call.1} parent=1 // pred_fallthru
      _
    // Predicated region
    $region50: #{tpu_custom_call.1} parent=1 // pred_check
      _
    $region51: #{tpu_custom_call.1} parent=1 // pred_check_branch
      %353 = sbr.rel (0) target = $region53
    $region52: #{tpu_custom_call.1} parent=1 // pred_region
      %355 = dma.done [#allocation5], 128
    $region53: #{tpu_custom_call.1} parent=1 // pred_fallthru
      _
    %356 = vsyncpa [#allocation4], 1
    %357 = vsyncpa [#allocation7], 1
    %358 = vsyncpa [#allocation10], 1
    %359 = vsyncpa [#allocation5], 1

</llo_original>
